<compile_context>
chip_gen: v5e
topology: v5e:2x2
jax: 0.10.0
libtpu: 0.0.40
codegen_flags: <defaults>
</compile_context>

<pallas_src>
import functools

import jax
import jax.numpy as jnp
from jax.experimental import pallas as pl
from jax.experimental.pallas import tpu as pltpu


def _round_up(x, m):
    return (x + m - 1) // m * m


# Conservative scoped-VMEM request that is legal on v5e/v6e (128 MiB phys)
# and v7x (64 MiB phys) alike.
_VMEM_LIMIT = 40 * 1024 * 1024
# Weights at or below this size are kept fully resident in VMEM.
_RESIDENT_W_BUDGET = 20 * 1024 * 1024


# -----------------------------------------------------------------------------
# Fused linear: out = x @ w (+ b)      x: (M, K), w: (K, N), b: (N,)
# Resident-weight path: grid over row tiles only; the whole weight has a
# constant index_map so it is DMA'd once and stays in VMEM.
# -----------------------------------------------------------------------------
def _linear_kernel_bias(x_ref, w_ref, b_ref, o_ref):
    acc = jnp.dot(x_ref[...], w_ref[...], preferred_element_type=jnp.float32)
    o_ref[...] = (acc + b_ref[...].astype(jnp.float32)).astype(o_ref.dtype)


def _linear_kernel_nobias(x_ref, w_ref, o_ref):
    o_ref[...] = jnp.dot(
        x_ref[...], w_ref[...], preferred_element_type=jnp.float32
    ).astype(o_ref.dtype)


# Streaming fallback (weight too large for VMEM): K is a reduction grid axis
# with an f32 VMEM accumulator; the bias is folded into the k==0 init.
def _linear_stream_kernel_bias(x_ref, w_ref, b_ref, o_ref, acc_ref):
    k = pl.program_id(1)

    @pl.when(k == 0)
    def _init():
        acc_ref[...] = jnp.broadcast_to(
            b_ref[...].astype(jnp.float32), acc_ref.shape)

    acc_ref[...] += jnp.dot(x_ref[...], w_ref[...],
                            preferred_element_type=jnp.float32)

    @pl.when(k == pl.num_programs(1) - 1)
    def _store():
        o_ref[...] = acc_ref[...].astype(o_ref.dtype)


def _linear_stream_kernel_nobias(x_ref, w_ref, o_ref, acc_ref):
    k = pl.program_id(1)

    @pl.when(k == 0)
    def _init():
        acc_ref[...] = jnp.zeros_like(acc_ref)

    acc_ref[...] += jnp.dot(x_ref[...], w_ref[...],
                            preferred_element_type=jnp.float32)

    @pl.when(k == pl.num_programs(1) - 1)
    def _store():
        o_ref[...] = acc_ref[...].astype(o_ref.dtype)


def linear_pallas(x2, w, b=None, *, out_dtype=None, row_tile=256, k_tile=512):
    """x2: (M, K); w: (K, N); b: (N,) or None.  Returns (M, N) in out_dtype."""
    M, K = x2.shape
    Kw, Nout = w.shape
    assert K == Kw
    out_dtype = out_dtype if out_dtype is not None else x2.dtype

    tm = min(row_tile, _round_up(M, 8))           # 8-aligned row tile
    Mp = _round_up(M, tm)
    if Mp != M:
        x2 = jnp.pad(x2, ((0, Mp - M), (0, 0)))

    b2 = None if b is None else b.reshape(1, Nout)
    w_bytes = K * Nout * jnp.dtype(w.dtype).itemsize

    if w_bytes <= _RESIDENT_W_BUDGET:
        # Resident-weight path: one dot per row tile, weight fetched once.
        # TODO(synk): on v7x (2 TCs) additionally tile Nout as a parallel axis
        # when M is small so both cores get work.
        in_specs = [pl.BlockSpec((tm, K), lambda i: (i, 0)),
                    pl.BlockSpec((K, Nout), lambda i: (0, 0))]
        args = [x2, w]
        kernel = _linear_kernel_nobias
        if b2 is not None:
            in_specs.append(pl.BlockSpec((1, Nout), lambda i: (0, 0)))
            args.append(b2)
            kernel = _linear_kernel_bias
        out = pl.pallas_call(
            kernel,
            out_shape=jax.ShapeDtypeStruct((Mp, Nout), out_dtype),
            grid_spec=pltpu.PrefetchScalarGridSpec(
                num_scalar_prefetch=0,
                grid=(Mp // tm,),
                in_specs=in_specs,
                out_specs=pl.BlockSpec((tm, Nout), lambda i: (i, 0)),
            ),
            compiler_params=pltpu.CompilerParams(
                dimension_semantics=("parallel",),
                vmem_limit_bytes=_VMEM_LIMIT,
            ),
        )(*args)
    else:
        # Streaming fallback for very large weights.
        tk = min(k_tile, _round_up(K, 128))
        Kp = _round_up(K, tk)
        if Kp != K:
            x2 = jnp.pad(x2, ((0, 0), (0, Kp - K)))
            w = jnp.pad(w, ((0, Kp - K), (0, 0)))
        in_specs = [pl.BlockSpec((tm, tk), lambda i, k: (i, k)),
                    pl.BlockSpec((tk, Nout), lambda i, k: (k, 0))]
        args = [x2, w]
        kernel = _linear_stream_kernel_nobias
        if b2 is not None:
            in_specs.append(pl.BlockSpec((1, Nout), lambda i, k: (0, 0)))
            args.append(b2)
            kernel = _linear_stream_kernel_bias
        out = pl.pallas_call(
            kernel,
            out_shape=jax.ShapeDtypeStruct((Mp, Nout), out_dtype),
            grid_spec=pltpu.PrefetchScalarGridSpec(
                num_scalar_prefetch=0,
                grid=(Mp // tm, Kp // tk),
                in_specs=in_specs,
                out_specs=pl.BlockSpec((tm, Nout), lambda i, k: (i, 0)),
                scratch_shapes=[pltpu.VMEM((tm, Nout), jnp.float32)],
            ),
            compiler_params=pltpu.CompilerParams(
                dimension_semantics=("parallel", "arbitrary"),
                vmem_limit_bytes=_VMEM_LIMIT,
            ),
        )(*args)

    return out[:M] if Mp != M else out


# -----------------------------------------------------------------------------
# Per-batch multi-head attention: for each head h,
#   o_h = softmax(q_h*scale @ k_h^T) @ v_h
# q/k/v blocks arrive lane-dense as (N, H*dh); heads are static lane slices.
# Softmax max/exp/sum in f32; normalization applied AFTER the PV matmul with an
# approx EUP reciprocal.  attn_drop has p=0.0 -> identity.
# TODO(synk): for long sequences switch to flash-style KV tiling with an
# online-softmax accumulator instead of the full (N, N) score matrix (needed
# on v7x's 64 MiB VMEM around N~2k).
# -----------------------------------------------------------------------------
def _attn_kernel(q_ref, k_ref, v_ref, o_ref, *, num_heads, head_dim, scale):
    q = q_ref[...]                                  # (N, H*dh), compute dtype
    k = k_ref[...]
    v = v_ref[...]

    outs = []
    for h in range(num_heads):                      # static unroll over heads
        sl = slice(h * head_dim, (h + 1) * head_dim)
        qh, kh, vh = q[:, sl], k[:, sl], v[:, sl]   # (N, dh) static lane slices
        # scores on the MXU in the input dtype; scale applied to f32 scores
        # (same math as (q*scale) @ k^T, slightly more accurate).
        s = jax.lax.dot_general(
            qh, kh, (((1,), (1,)), ((), ())),
            preferred_element_type=jnp.float32) * scale          # (N, N) f32
        m = jnp.max(s, axis=-1, keepdims=True)
        p = jnp.exp(s - m)                                        # f32
        l = jnp.sum(p, axis=-1, keepdims=True)                    # (N, 1)
        oh = jnp.dot(p.astype(vh.dtype), vh,
                     preferred_element_type=jnp.float32)          # (N, dh)
        outs.append(oh * pl.reciprocal(l, approx=True))
    # one dense lane-wide (N, H*dh) store
    o_ref[...] = jnp.concatenate(outs, axis=-1).astype(o_ref.dtype)


def _mha_pallas(qkv, B, N, num_heads, head_dim, scale, out_dtype):
    """qkv: (B, N, 3*all_head_dim) from the fused QKV linear (no transposes)."""
    all_head_dim = num_heads * head_dim
    kernel = functools.partial(_attn_kernel, num_heads=num_heads,
                               head_dim=head_dim, scale=scale)
    blk = (pl.Squeezed(), N, all_head_dim)
    out_spec = pl.BlockSpec(blk, lambda b: (b, 0, 0))
    params = pltpu.CompilerParams(dimension_semantics=("parallel",),
                                  vmem_limit_bytes=_VMEM_LIMIT)

    if all_head_dim % 128 == 0:
        # Select q/k/v planes of the same qkv array via index_maps (lane-dense
        # 128-multiple blocks) — no wrapper slicing or transposing.
        in_specs = [pl.BlockSpec(blk, lambda b: (b, 0, 0)),   # q plane
                    pl.BlockSpec(blk, lambda b: (b, 0, 1)),   # k plane
                    pl.BlockSpec(blk, lambda b: (b, 0, 2))]   # v plane
        args = (qkv, qkv, qkv)
    else:
        # Fallback for non-128-multiple head widths: contiguous XLA slices
        # (still no transposes), full-dim blocks.
        qkv4 = qkv.reshape(B, N, 3, all_head_dim)
        args = (qkv4[:, :, 0], qkv4[:, :, 1], qkv4[:, :, 2])
        in_specs = [out_spec, out_spec, out_spec]

    return pl.pallas_call(
        kernel,
        out_shape=jax.ShapeDtypeStruct((B, N, all_head_dim), out_dtype),
        grid_spec=pltpu.PrefetchScalarGridSpec(
            num_scalar_prefetch=0,
            grid=(B,),
            in_specs=in_specs,
            out_specs=out_spec,
        ),
        compiler_params=params,
    )(*args)


# -----------------------------------------------------------------------------
# Full Attention forward
# -----------------------------------------------------------------------------
def attention_pallas(x, w_qkv, w_proj, b_proj, *, num_heads,
                     q_bias=None, v_bias=None, qk_scale=None,
                     compute_dtype=jnp.bfloat16):
    """x: (B, N, C); w_qkv: (C, 3*all_head_dim); w_proj: (all_head_dim, C).

    compute_dtype (default bf16) is used for MXU inputs; accumulation,
    softmax and bias math stay f32.  Output keeps x.dtype.
    """
    B, N, C = x.shape
    all_head_dim = w_qkv.shape[1] // 3
    head_dim = all_head_dim // num_heads
    scale = qk_scale if qk_scale is not None else head_dim ** (-0.5)

    # torch: qkv_bias = cat(q_bias, zeros_like(v_bias), v_bias)
    if (q_bias is None) != (v_bias is None):
        raise ValueError("q_bias and v_bias must both be provided or both be None")
    qkv_bias = None
    if q_bias is not None:
        qkv_bias = jnp.concatenate(
            [q_bias, jnp.zeros_like(v_bias), v_bias], axis=0).astype(jnp.float32)

    cdt = compute_dtype if compute_dtype is not None else x.dtype

    # fused QKV linear (bf16 MXU, f32 accumulate, bias added in f32)
    x2 = x.reshape(B * N, C).astype(cdt)
    qkv = linear_pallas(x2, w_qkv.astype(cdt), qkv_bias, out_dtype=cdt)
    qkv = qkv.reshape(B, N, 3 * all_head_dim)

    # TODO(synk): qk_norm, window relative-position bias and external
    # rel_pos_bias are None in the default config and are not implemented.
    o = _mha_pallas(qkv, B, N, num_heads, head_dim, scale, out_dtype=cdt)

    # output already in (B, N, H*dh) layout -> free reshape into the proj
    out = linear_pallas(o.reshape(B * N, all_head_dim), w_proj.astype(cdt),
                        None if b_proj is None else b_proj.astype(jnp.float32),
                        out_dtype=x.dtype)          # proj_drop p=0.0 -> identity
    return out.reshape(B, N, C)


# -----------------------------------------------------------------------------
# Pure-JAX f32 reference (mirrors the torch forward)
# -----------------------------------------------------------------------------
def attention_ref(x, w_qkv, w_proj, b_proj, num_heads, q_bias=None, v_bias=None):
    B, N, C = x.shape
    all_head_dim = w_qkv.shape[1] // 3
    head_dim = all_head_dim // num_heads
    scale = head_dim ** (-0.5)

    qkv = x @ w_qkv
    if q_bias is not None:
        qkv = qkv + jnp.concatenate([q_bias, jnp.zeros_like(v_bias), v_bias])
    qkv = qkv.reshape(B, N, 3, num_heads, head_dim).transpose(2, 0, 3, 1, 4)
    q, k, v = qkv[0] * scale, qkv[1], qkv[2]
    attn = jax.nn.softmax(jnp.einsum("bhqd,bhkd->bhqk", q, k), axis=-1)
    o = jnp.einsum("bhqk,bhkd->bhqd", attn, v)
    o = o.transpose(0, 2, 1, 3).reshape(B, N, all_head_dim)
    return o @ w_proj + b_proj


if __name__ == "__main__":
    # Small shapes consistent with the module: dim=128, 8 heads -> head_dim=16.
    B, N = 2, 16
    dim = 128
    num_heads = 8

    key = jax.random.PRNGKey(0)
    kx, kqkv, kqb, kvb, kpw, kpb = jax.random.split(key, 6)

    x = jax.random.normal(kx, (B, N, dim), dtype=jnp.float32)
    # deterministic synthetic params (weights stored (in, out) = W^T of torch)
    w_qkv = jax.random.normal(kqkv, (dim, 3 * dim), dtype=jnp.float32) * 0.05
    q_bias = jax.random.normal(kqb, (dim,), dtype=jnp.float32) * 0.02
    v_bias = jax.random.normal(kvb, (dim,), dtype=jnp.float32) * 0.02
    w_proj = jax.random.normal(kpw, (dim, dim), dtype=jnp.float32) * 0.05
    b_proj = jax.random.normal(kpb, (dim,), dtype=jnp.float32) * 0.02

    out = attention_pallas(x, w_qkv, w_proj, b_proj, num_heads=num_heads,
                           q_bias=q_bias, v_bias=v_bias)
    jax.block_until_ready(out)

    ref = attention_ref(x, w_qkv, w_proj, b_proj, num_heads,
                        q_bias=q_bias, v_bias=v_bias)
    assert out.shape == (B, N, dim)
    # bf16 MXU path vs f32 reference -> loose tolerance (expected ~1e-2 max err)
    err = float(jnp.max(jnp.abs(out - ref)))
    assert err < 5e-2, "max abs err = %g" % err

    print("KERNEL_OK")
</pallas_src>

<mosaic_0001>
module attributes {stable_mosaic.version = 11 : i64} {
  func.func @_linear_kernel_bias(%arg0: i32, %arg1: memref<32x128xbf16, #tpu.memory_space<vmem>>, %arg2: memref<128x384xbf16, #tpu.memory_space<vmem>>, %arg3: memref<1x384xf32, #tpu.memory_space<vmem>>, %arg4: memref<32x384xbf16, #tpu.memory_space<vmem>>) attributes {dimension_semantics = [#tpu.dimension_semantics<parallel>], iteration_bounds = array<i64: 1>, scalar_prefetch = 0 : i64, scratch_operands = 0 : i64, tpu.core_type = #tpu.core_type<tc>, window_params = [{transform_indices = @transform_0, window_bounds = array<i64: 32, 128>}, {pipeline_mode = #tpu.pipeline_mode<synchronous>, transform_indices = @transform_1, window_bounds = array<i64: 128, 384>}, {pipeline_mode = #tpu.pipeline_mode<synchronous>, transform_indices = @transform_2, window_bounds = array<i64: 1, 384>}, {transform_indices = @transform_3, window_bounds = array<i64: 32, 384>}]} {
    %c0 = arith.constant 0 : index
    %c0_0 = arith.constant 0 : index
    %0 = vector.load %arg1[%c0, %c0_0] : memref<32x128xbf16, #tpu.memory_space<vmem>>, vector<32x128xbf16>
    %c0_1 = arith.constant 0 : index
    %c0_2 = arith.constant 0 : index
    %1 = vector.load %arg2[%c0_1, %c0_2] : memref<128x384xbf16, #tpu.memory_space<vmem>>, vector<128x384xbf16>
    %cst = arith.constant dense<0.000000e+00> : vector<32x384xf32>
    %2 = tpu.matmul %0, %1, %cst {dimension_numbers = #tpu.dot_dimension_numbers<[1], [0], [0], [1], [0, 0, 1, 1], [], []>} : vector<32x128xbf16>, vector<128x384xbf16>, vector<32x384xf32> -> vector<32x384xf32>
    %c0_3 = arith.constant 0 : index
    %c0_4 = arith.constant 0 : index
    %3 = vector.load %arg3[%c0_3, %c0_4] : memref<1x384xf32, #tpu.memory_space<vmem>>, vector<1x384xf32>
    %4 = vector.broadcast %3 : vector<1x384xf32> to vector<32x384xf32>
    %5 = arith.addf %2, %4 : vector<32x384xf32>
    %6 = arith.truncf %5 : vector<32x384xf32> to vector<32x384xbf16>
    %c0_5 = arith.constant 0 : index
    %c0_6 = arith.constant 0 : index
    %7 = vector.load %arg4[%c0_5, %c0_6] : memref<32x384xbf16, #tpu.memory_space<vmem>>, vector<32x384xbf16>
    tpu.vector_store %arg4[%c0_5, %c0_6], %6 {strides = array<i32>} : memref<32x384xbf16, #tpu.memory_space<vmem>>, vector<32x384xbf16>,
    return
  }
  func.func @transform_0(%arg0: i32) -> (i32, i32) {
    %c0_i32 = arith.constant 0 : i32
    %c0_i32_0 = arith.constant 0 : i32
    return %arg0, %c0_i32 : i32, i32
  }
  func.func @transform_1(%arg0: i32) -> (i32, i32) {
    %c0_i32 = arith.constant 0 : i32
    %c0_i32_0 = arith.constant 0 : i32
    %c0_i32_1 = arith.constant 0 : i32
    return %c0_i32, %c0_i32_0 : i32, i32
  }
  func.func @transform_2(%arg0: i32) -> (i32, i32) {
    %c0_i32 = arith.constant 0 : i32
    %c0_i32_0 = arith.constant 0 : i32
    %c0_i32_1 = arith.constant 0 : i32
    return %c0_i32, %c0_i32_0 : i32, i32
  }
  func.func @transform_3(%arg0: i32) -> (i32, i32) {
    %c0_i32 = arith.constant 0 : i32
    %c0_i32_0 = arith.constant 0 : i32
    return %arg0, %c0_i32 : i32, i32
  }
}

</mosaic_0001>

<llo_original>
// kernel: tpu_custom_call.1
$region0: #{tpu_custom_call.1}
  #allocation0 [shape = 'u32[]', space=smem, size = 0x4, offset = 0x4, fixed_abs, tag = 'smem constant byte address 0x4 - core index']
  #allocation1 [shape = 'u32[72,128]{1,0:T(1,128)}', space=vmem, size = 0x9000, scoped, tag = 'internal scratch']
  %s0 = inlined_call_operand.hbm [shape: bf16[32,128], index: 0, kind: input, shape index: {}]
  %s1 = inlined_call_operand.hbm [shape: bf16[128,384], index: 1, kind: input, shape index: {}]
  %s2 = inlined_call_operand.hbm [shape: f32[1,384], index: 2, kind: input, shape index: {}]
  %s3 = inlined_call_operand.hbm [shape: bf16[32,384], index: 3, kind: output, shape index: {}]
  %s4 = sld [smem:[#allocation0]]
  $region34: #{tpu_custom_call.1} parent=0
    _
  %s6 = ssub.s32 1, %s4
  %s7 = scalar_select 0, %s6, %s4
  $region1: #{tpu_custom_call.1} parent=0
    #allocation2 [shape = 'u8[8192]{0}', space=vmem, size = 0x2000, scoped, tag = 'input window, operand 0, single buffered']
    #allocation3 [shape = 's32[1]{0}', space=sflag, size = 0x4, scoped, tag = 'scoped memory for tpu_custom_call.1']
    #allocation4 [shape = 's32[1]{0}', space=sflag, size = 0x4, scoped, tag = 'scoped memory for tpu_custom_call.1']
    #allocation5 [shape = 'u8[98304]{0}', space=vmem, size = 0x18000, scoped, tag = 'input window, operand 1, single buffered']
    #allocation6 [shape = 's32[1]{0}', space=sflag, size = 0x4, scoped, tag = 'scoped memory for tpu_custom_call.1']
    #allocation7 [shape = 'u8[1536]{0}', space=vmem, size = 0x800, scoped, tag = 'input window, operand 2, single buffered']
    #allocation8 [shape = 'u8[24576]{0}', space=vmem, size = 0x6000, scoped, tag = 'output window, operand 0, single buffered']
    %8 = vsyncpa [#allocation3], 0
    %9 = vsyncpa [#allocation6], 0
    %10 = vsyncpa [#allocation4], 0
    // Predicated region
    $region2: #{tpu_custom_call.1} parent=1 // pred_check
      _
    $region3: #{tpu_custom_call.1} parent=1 // pred_check_branch
      %12 = sbr.rel (0) target = $region5
    $region4: #{tpu_custom_call.1} parent=1 // pred_region
      %14 = vsyncadd [#allocation3], 0
      %s15 = sshll.u32 %s0, 4
      %s16 = int_to_ptr.hbm [resolvable:$true] %s15
      %s17 = sshll.u32 [#allocation2], 4
      %s18 = int_to_ptr.vmem [resolvable:$true] %s17
      %23 = dma.hbm_to_vmem [thread:$0]  %s16, 256, %s18, [#allocation3], 64, 64, 4
    $region5: #{tpu_custom_call.1} parent=1 // pred_fallthru
      _
    // Predicated region
    $region6: #{tpu_custom_call.1} parent=1 // pred_check
      _
    $region7: #{tpu_custom_call.1} parent=1 // pred_check_branch
      %25 = sbr.rel (0) target = $region9
    $region8: #{tpu_custom_call.1} parent=1 // pred_region
      %27 = vsyncadd [#allocation6], 0
      %s28 = sshll.u32 %s1, 4
      %s29 = int_to_ptr.hbm [resolvable:$true] %s28
      %s30 = sshll.u32 [#allocation5], 4
      %s31 = int_to_ptr.vmem [resolvable:$true] %s30
      %36 = dma.hbm_to_vmem [thread:$0]  %s29, 3072, %s31, [#allocation6], 192, 192, 12
    $region9: #{tpu_custom_call.1} parent=1 // pred_fallthru
      _
    // Predicated region
    $region10: #{tpu_custom_call.1} parent=1 // pred_check
      _
    $region11: #{tpu_custom_call.1} parent=1 // pred_check_branch
      %38 = sbr.rel (0) target = $region13
    $region12: #{tpu_custom_call.1} parent=1 // pred_region
      %40 = vsyncadd [#allocation6], 0
      %s42 = sshll.u32 %s2, 4
      %s43 = int_to_ptr.hbm [resolvable:$true] %s42
      %s44 = sshll.u32 [#allocation7], 4
      %s45 = int_to_ptr.vmem [resolvable:$true] %s44
      %47 = dma.hbm_to_vmem [thread:$0]  %s43, 48, %s45, [#allocation6]
    $region13: #{tpu_custom_call.1} parent=1 // pred_fallthru
      _
    // Predicated region
    $region14: #{tpu_custom_call.1} parent=1 // pred_check
      _
    $region15: #{tpu_custom_call.1} parent=1 // pred_check_branch
      %49 = sbr.rel (0) target = $region17
    $region16: #{tpu_custom_call.1} parent=1 // pred_region
      %51 = dma.done [#allocation3], 256
    $region17: #{tpu_custom_call.1} parent=1 // pred_fallthru
      _
    // Predicated region
    $region18: #{tpu_custom_call.1} parent=1 // pred_check
      _
    $region19: #{tpu_custom_call.1} parent=1 // pred_check_branch
      %53 = sbr.rel (0) target = $region21
    $region20: #{tpu_custom_call.1} parent=1 // pred_region
      %55 = dma.done [#allocation6], 3072
    $region21: #{tpu_custom_call.1} parent=1 // pred_fallthru
      _
    // Predicated region
    $region22: #{tpu_custom_call.1} parent=1 // pred_check
      _
    $region23: #{tpu_custom_call.1} parent=1 // pred_check_branch
      %57 = sbr.rel (0) target = $region25
    $region24: #{tpu_custom_call.1} parent=1 // pred_region
      %59 = dma.done [#allocation6], 48
    $region25: #{tpu_custom_call.1} parent=1 // pred_fallthru
      _
    %v60 = vld [vmem:[#allocation2] sm:$0xf]
    %v61 = vld [vmem:[#allocation2 + $0x4] sm:$0xf]
    %v62 = vld [vmem:[#allocation2 + $0x8] sm:$0xf]
    %v63 = vld [vmem:[#allocation2 + $0xc] sm:$0xf]
    %v64 = vld [vmem:[#allocation5] sm:$0xff]
    %v65 = vld [vmem:[#allocation5 + $0x8] sm:$0xf]
    %v66 = vld [vmem:[#allocation5 + $0xc] sm:$0xff]
    %v67 = vld [vmem:[#allocation5 + $0x14] sm:$0xf]
    %v68 = vld [vmem:[#allocation5 + $0x18] sm:$0xff]
    %v69 = vld [vmem:[#allocation5 + $0x20] sm:$0xf]
    %v70 = vld [vmem:[#allocation5 + $0x24] sm:$0xff]
    %v71 = vld [vmem:[#allocation5 + $0x2c] sm:$0xf]
    %v72 = vld [vmem:[#allocation5 + $0x30] sm:$0xff]
    %v73 = vld [vmem:[#allocation5 + $0x38] sm:$0xf]
    %v74 = vld [vmem:[#allocation5 + $0x3c] sm:$0xff]
    %v75 = vld [vmem:[#allocation5 + $0x44] sm:$0xf]
    %v76 = vld [vmem:[#allocation5 + $0x48] sm:$0xff]
    %v77 = vld [vmem:[#allocation5 + $0x50] sm:$0xf]
    %v78 = vld [vmem:[#allocation5 + $0x54] sm:$0xff]
    %v79 = vld [vmem:[#allocation5 + $0x5c] sm:$0xf]
    %v80 = vld [vmem:[#allocation5 + $0x60] sm:$0xff]
    %v81 = vld [vmem:[#allocation5 + $0x68] sm:$0xf]
    %v82 = vld [vmem:[#allocation5 + $0x6c] sm:$0xff]
    %v83 = vld [vmem:[#allocation5 + $0x74] sm:$0xf]
    %v84 = vld [vmem:[#allocation5 + $0x78] sm:$0xff]
    %v85 = vld [vmem:[#allocation5 + $0x80] sm:$0xf]
    %v86 = vld [vmem:[#allocation5 + $0x84] sm:$0xff]
    %v87 = vld [vmem:[#allocation5 + $0x8c] sm:$0xf]
    %v88 = vld [vmem:[#allocation5 + $0x90] sm:$0xff]
    %v89 = vld [vmem:[#allocation5 + $0x98] sm:$0xf]
    %v90 = vld [vmem:[#allocation5 + $0x9c] sm:$0xff]
    %v91 = vld [vmem:[#allocation5 + $0xa4] sm:$0xf]
    %v92 = vld [vmem:[#allocation5 + $0xa8] sm:$0xff]
    %v93 = vld [vmem:[#allocation5 + $0xb0] sm:$0xf]
    %v94 = vld [vmem:[#allocation5 + $0xb4] sm:$0xff]
    %v95 = vld [vmem:[#allocation5 + $0xbc] sm:$0xf]
    %v96 = vld [vmem:[#allocation7] sm:$0x7]
    %v98 = vperm.slane %v96, 0
    %v99 = vperm.slane %v96, 1
    %v100 = vperm.slane %v96, 2
    %v108 = vunpack.c.l.b16 %v60
    %v109 = vunpack.c.l.b16 %v61
    %v110 = vunpack.c.l.b16 %v62
    %v111 = vunpack.c.l.b16 %v63
    %v112 = vpack.c.b16 %v109, %v108
    %v113 = vpack.c.b16 %v111, %v110
    %v148 = vunpack.c.l.b16 %v64
    %v149 = vunpack.c.h.b16 %v64
    %v150 = vunpack.c.l.b16 %v65
    %v151 = vunpack.c.l.b16 %v66
    %v152 = vunpack.c.h.b16 %v66
    %v153 = vunpack.c.l.b16 %v67
    %v154 = vunpack.c.l.b16 %v68
    %v155 = vunpack.c.h.b16 %v68
    %v156 = vunpack.c.l.b16 %v69
    %v157 = vunpack.c.l.b16 %v70
    %v158 = vunpack.c.h.b16 %v70
    %v159 = vunpack.c.l.b16 %v71
    %v160 = vunpack.c.l.b16 %v72
    %v161 = vunpack.c.h.b16 %v72
    %v162 = vunpack.c.l.b16 %v73
    %v163 = vunpack.c.l.b16 %v74
    %v164 = vunpack.c.h.b16 %v74
    %v165 = vunpack.c.l.b16 %v75
    %v166 = vunpack.c.l.b16 %v76
    %v167 = vunpack.c.h.b16 %v76
    %v168 = vunpack.c.l.b16 %v77
    %v169 = vunpack.c.l.b16 %v78
    %v170 = vunpack.c.h.b16 %v78
    %v171 = vunpack.c.l.b16 %v79
    %v172 = vunpack.c.l.b16 %v80
    %v173 = vunpack.c.h.b16 %v80
    %v174 = vunpack.c.l.b16 %v81
    %v175 = vunpack.c.l.b16 %v82
    %v176 = vunpack.c.h.b16 %v82
    %v177 = vunpack.c.l.b16 %v83
    %v178 = vunpack.c.l.b16 %v84
    %v179 = vunpack.c.h.b16 %v84
    %v180 = vunpack.c.l.b16 %v85
    %v181 = vunpack.c.l.b16 %v86
    %v182 = vunpack.c.h.b16 %v86
    %v183 = vunpack.c.l.b16 %v87
    %v184 = vunpack.c.l.b16 %v88
    %v185 = vunpack.c.h.b16 %v88
    %v186 = vunpack.c.l.b16 %v89
    %v187 = vunpack.c.l.b16 %v90
    %v188 = vunpack.c.h.b16 %v90
    %v189 = vunpack.c.l.b16 %v91
    %v190 = vunpack.c.l.b16 %v92
    %v191 = vunpack.c.h.b16 %v92
    %v192 = vunpack.c.l.b16 %v93
    %v193 = vunpack.c.l.b16 %v94
    %v194 = vunpack.c.h.b16 %v94
    %v195 = vunpack.c.l.b16 %v95
    %v196 = vpack.c.b16 %v151, %v148
    %v197 = vpack.c.b16 %v152, %v149
    %v198 = vpack.c.b16 %v153, %v150
    %v199 = vpack.c.b16 %v157, %v154
    %v200 = vpack.c.b16 %v158, %v155
    %v201 = vpack.c.b16 %v159, %v156
    %v202 = vpack.c.b16 %v163, %v160
    %v203 = vpack.c.b16 %v164, %v161
    %v204 = vpack.c.b16 %v165, %v162
    %v205 = vpack.c.b16 %v169, %v166
    %v206 = vpack.c.b16 %v170, %v167
    %v207 = vpack.c.b16 %v171, %v168
    %v208 = vpack.c.b16 %v175, %v172
    %v209 = vpack.c.b16 %v176, %v173
    %v210 = vpack.c.b16 %v177, %v174
    %v211 = vpack.c.b16 %v181, %v178
    %v212 = vpack.c.b16 %v182, %v179
    %v213 = vpack.c.b16 %v183, %v180
    %v214 = vpack.c.b16 %v187, %v184
    %v215 = vpack.c.b16 %v188, %v185
    %v216 = vpack.c.b16 %v189, %v186
    %v217 = vpack.c.b16 %v193, %v190
    %v218 = vpack.c.b16 %v194, %v191
    %v219 = vpack.c.b16 %v195, %v192
    %244 = vmatpush.bf16.msra.mxu0 %v217
    %245 = vmatpush.bf16.msra.mxu0 %v214
    %246 = vmatpush.bf16.msra.mxu0 %v211
    %247 = vmatpush.bf16.msra.mxu0 %v208
    %248 = vmatpush.bf16.msra.mxu0 %v205
    %249 = vmatpush.bf16.msra.mxu0 %v202
    %250 = vmatpush.bf16.msra.mxu0 %v199
    %251 = vmatpush.bf16.msra.mxu0 %v196
    %252 = vmatmul.bf16.gmra.mxu0 %v112
    %v253 = vpop.f32.mrf.mxu0
    %v254 = vadd.f32 %v98, %v253
    %v255 = vpop.f32.mrf.mxu0
    %v256 = vadd.f32 %v98, %v255
    %257 = vmatmul.bf16.gmra.mxu0 %v113
    %v258 = vpop.f32.mrf.mxu0
    %v259 = vadd.f32 %v98, %v258
    %v260 = vpop.f32.mrf.mxu0
    %v261 = vadd.f32 %v98, %v260
    %262 = vdwg.mxu0
    %263 = vmatpush.bf16.msra.mxu0 %v218
    %264 = vmatpush.bf16.msra.mxu0 %v215
    %265 = vmatpush.bf16.msra.mxu0 %v212
    %266 = vmatpush.bf16.msra.mxu0 %v209
    %267 = vmatpush.bf16.msra.mxu0 %v206
    %268 = vmatpush.bf16.msra.mxu0 %v203
    %269 = vmatpush.bf16.msra.mxu0 %v200
    %270 = vmatpush.bf16.msra.mxu0 %v197
    %271 = vmatmul.bf16.gmra.mxu0 %v112
    %v272 = vpop.f32.mrf.mxu0
    %v273 = vadd.f32 %v99, %v272
    %v274 = vpop.f32.mrf.mxu0
    %v275 = vadd.f32 %v99, %v274
    %276 = vmatmul.bf16.gmra.mxu0 %v113
    %v277 = vpop.f32.mrf.mxu0
    %v278 = vadd.f32 %v99, %v277
    %v279 = vpop.f32.mrf.mxu0
    %v280 = vadd.f32 %v99, %v279
    %281 = vdwg.mxu0
    %282 = vmatpush.bf16.msra.mxu0 %v219
    %283 = vmatpush.bf16.msra.mxu0 %v216
    %284 = vmatpush.bf16.msra.mxu0 %v213
    %285 = vmatpush.bf16.msra.mxu0 %v210
    %286 = vmatpush.bf16.msra.mxu0 %v207
    %287 = vmatpush.bf16.msra.mxu0 %v204
    %288 = vmatpush.bf16.msra.mxu0 %v201
    %289 = vmatpush.bf16.msra.mxu0 %v198
    %290 = vmatmul.bf16.gmra.mxu0 %v112
    %v291 = vpop.f32.mrf.mxu0
    %v292 = vadd.f32 %v100, %v291
    %v293 = vpop.f32.mrf.mxu0
    %v294 = vadd.f32 %v100, %v293
    %295 = vmatmul.bf16.gmra.mxu0 %v113
    %v296 = vpop.f32.mrf.mxu0
    %v297 = vadd.f32 %v100, %v296
    %v298 = vpop.f32.mrf.mxu0
    %v299 = vadd.f32 %v100, %v298
    %300 = vdwg.mxu0
    %v301 = vpack.c.bf16 %v273, %v254
    %v302 = vpack.c.bf16 %v292, %v292
    %v303 = vpack.c.bf16 %v275, %v256
    %v304 = vpack.c.bf16 %v294, %v294
    %v305 = vpack.c.bf16 %v278, %v259
    %v306 = vpack.c.bf16 %v297, %v297
    %v307 = vpack.c.bf16 %v280, %v261
    %v308 = vpack.c.bf16 %v299, %v299
    %309 = vst [vmem:[#allocation8] sm:$0xff] %v301
    %310 = vst [vmem:[#allocation8 + $0x8] sm:$0xf] %v302
    %311 = vst [vmem:[#allocation8 + $0xc] sm:$0xff] %v303
    %312 = vst [vmem:[#allocation8 + $0x14] sm:$0xf] %v304
    %313 = vst [vmem:[#allocation8 + $0x18] sm:$0xff] %v305
    %314 = vst [vmem:[#allocation8 + $0x20] sm:$0xf] %v306
    %315 = vst [vmem:[#allocation8 + $0x24] sm:$0xff] %v307
    %316 = vst [vmem:[#allocation8 + $0x2c] sm:$0xf] %v308
    // Predicated region
    $region26: #{tpu_custom_call.1} parent=1 // pred_check
      _
    $region27: #{tpu_custom_call.1} parent=1 // pred_check_branch
      %318 = sbr.rel (0) target = $region29
    $region28: #{tpu_custom_call.1} parent=1 // pred_region
      %320 = vsyncadd [#allocation4], 0
      %s321 = sshll.u32 [#allocation8], 4
      %s322 = int_to_ptr.vmem [resolvable:$true] %s321
      %s323 = sshll.u32 %s3, 4
      %s324 = int_to_ptr.hbm [resolvable:$true] %s323
      %329 = dma.vmem_to_hbm [thread:$0]  %s322, 768, %s324, [#allocation4], 192, 192, 12
    $region29: #{tpu_custom_call.1} parent=1 // pred_fallthru
      _
    // Predicated region
    $region30: #{tpu_custom_call.1} parent=1 // pred_check
      _
    $region31: #{tpu_custom_call.1} parent=1 // pred_check_branch
      %331 = sbr.rel (0) target = $region33
    $region32: #{tpu_custom_call.1} parent=1 // pred_region
      %333 = dma.done [#allocation4], 768
    $region33: #{tpu_custom_call.1} parent=1 // pred_fallthru
      _
    %334 = vsyncpa [#allocation3], 1
    %335 = vsyncpa [#allocation6], 1
    %336 = vsyncpa [#allocation4], 1

</llo_original>
